<compile_context>
chip_gen: v7x
topology: tpu7x:2x2x1
jax: 0.10.0
libtpu: 0.0.40
codegen_flags: <defaults>
</compile_context>

<pallas_src>
import jax
import jax.numpy as jnp
from jax.experimental import pallas as pl
from jax.experimental.pallas import tpu as pltpu


def ca_layer_kernel(x_ref, w1_ref, b1_ref, w2_ref, b2_ref, o_ref):
    # x_ref: (1, C, HW) block = one image; channels on sublanes, spatial on lanes.
    hw = x_ref.shape[-1]
    inv_hw = jnp.float32(1.0 / hw)

    # ---- Global average pool over spatial -> (1, C) channel vector ----------
    x_pool = x_ref[...].astype(jnp.float32)            # first (and only) HBM read of x
    m = jnp.sum(x_pool, axis=2) * inv_hw               # (1, C)

    # ---- 1x1 conv C -> C/r, + bias, ReLU.  w1: (Cr, C), b1: (Cr, 1) ---------
    # Tiny contraction over C: broadcast-multiply + lane reduce (VPU/XLU, no MXU).
    h = jnp.sum(m * w1_ref[...], axis=1, keepdims=True) + b1_ref[...]   # (Cr, 1)
    h = jnp.maximum(h, 0.0)

    # ---- 1x1 conv C/r -> C, + bias, Sigmoid.  w2: (Cr, C), b2: (1, C) -------
    z = jnp.sum(h * w2_ref[...], axis=0, keepdims=True) + b2_ref[...]   # (1, C)
    y = 1.0 / (1.0 + jnp.exp(-z))                                       # sigmoid gates

    # ---- Per-channel rescale of the input block ------------------------------
    # Re-load x_ref at store time so the full tile need not stay live in vregs
    # across the gate computation above.
    o_ref[...] = (x_ref[...].astype(jnp.float32) * y[:, :, None]).astype(o_ref.dtype)


def ca_layer_forward(x_nchw, params):
    """x_nchw: (B, C, H, W). Returns x * sigmoid(conv(relu(conv(avgpool(x)))))."""
    w1, b1, w2, b2 = params
    B, C, H, W = x_nchw.shape
    Cr = w1.shape[0]
    HW = H * W

    # Pure row-major reshape: no transpose, no extra HBM traffic.
    x3 = x_nchw.reshape(B, C, HW)

    itemsize = jnp.dtype(x_nchw.dtype).itemsize
    cost = pl.CostEstimate(
        flops=int(2 * B * C * HW + 4 * B * C * Cr),
        transcendentals=int(B * C),
        bytes_accessed=int(2 * B * C * HW * itemsize + (2 * Cr * C + Cr + C) * 4),
    )

    out3 = pl.pallas_call(
        ca_layer_kernel,
        out_shape=jax.ShapeDtypeStruct((B, C, HW), x_nchw.dtype),
        grid_spec=pltpu.PrefetchScalarGridSpec(
            num_scalar_prefetch=0,
            grid=(B,),
            in_specs=[
                pl.BlockSpec((1, C, HW), lambda b: (b, 0, 0)),  # x (one image per step)
                pl.BlockSpec((Cr, C), lambda b: (0, 0)),        # w1 (resident: same block idx)
                pl.BlockSpec((Cr, 1), lambda b: (0, 0)),        # b1
                pl.BlockSpec((Cr, C), lambda b: (0, 0)),        # w2
                pl.BlockSpec((1, C), lambda b: (0, 0)),         # b2
            ],
            out_specs=pl.BlockSpec((1, C, HW), lambda b: (b, 0, 0)),
        ),
        compiler_params=pltpu.CompilerParams(
            dimension_semantics=("parallel",)),
        cost_estimate=cost,
    )(x3, w1, b1, w2, b2)

    return out3.reshape(B, C, H, W)


def init_params(key, channel=64, reduction=16):
    """Deterministic synthetic parameters in the kernel's layout (see header)."""
    cr = channel // reduction
    k1, k2, k3, k4 = jax.random.split(key, 4)
    w1 = jax.random.normal(k1, (cr, channel), jnp.float32) * 0.2   # conv1 weight   (Cr, C)
    b1 = jax.random.normal(k2, (cr, 1), jnp.float32) * 0.1         # conv1 bias     (Cr, 1)
    w2 = jax.random.normal(k3, (cr, channel), jnp.float32) * 0.2   # conv2 weight^T (Cr, C)
    b2 = jax.random.normal(k4, (1, channel), jnp.float32) * 0.1    # conv2 bias     (1, C)
    return (w1, b1, w2, b2)


def reference_forward(x_nchw, params):
    """Pure-JAX reference of CALayer.forward for a sanity check."""
    w1, b1, w2, b2 = params
    m = jnp.mean(x_nchw, axis=(2, 3))                      # (B, C) global avg pool
    h = jnp.maximum(m @ w1.T + b1[:, 0], 0.0)              # (B, Cr)
    z = h @ w2 + b2                                        # (B, C)
    y = 1.0 / (1.0 + jnp.exp(-z))                          # sigmoid
    return x_nchw * y[:, :, None, None]


if __name__ == "__main__":
    key = jax.random.PRNGKey(0)
    kx, kp = jax.random.split(key)

    B, C, H, W = 2, 64, 16, 16
    reduction = 16

    x = jax.random.normal(kx, (B, C, H, W), jnp.float32)
    params = init_params(kp, channel=C, reduction=reduction)

    out = ca_layer_forward(x, params)
    out = jax.block_until_ready(out)

    ref = reference_forward(x, params)
    assert out.shape == (B, C, H, W), out.shape
    assert jnp.allclose(out, ref, atol=1e-5, rtol=1e-5), float(jnp.max(jnp.abs(out - ref)))

    print("KERNEL_OK")
</pallas_src>

<mosaic_0001>
module attributes {stable_mosaic.version = 11 : i64} {
  func.func @ca_layer_kernel(%arg0: i32, %arg1: memref<1x64x256xf32, #tpu.memory_space<vmem>>, %arg2: memref<4x64xf32, #tpu.memory_space<vmem>>, %arg3: memref<4x1xf32, #tpu.memory_space<vmem>>, %arg4: memref<4x64xf32, #tpu.memory_space<vmem>>, %arg5: memref<1x64xf32, #tpu.memory_space<vmem>>, %arg6: memref<1x64x256xf32, #tpu.memory_space<vmem>>) attributes {dimension_semantics = [#tpu.dimension_semantics<parallel>], iteration_bounds = array<i64: 2>, scalar_prefetch = 0 : i64, scratch_operands = 0 : i64, tpu.core_type = #tpu.core_type<tc>, window_params = [{transform_indices = @transform_0, window_bounds = array<i64: 1, 64, 256>}, {pipeline_mode = #tpu.pipeline_mode<synchronous>, transform_indices = @transform_1, window_bounds = array<i64: 4, 64>}, {pipeline_mode = #tpu.pipeline_mode<synchronous>, transform_indices = @transform_2, window_bounds = array<i64: 4, 1>}, {pipeline_mode = #tpu.pipeline_mode<synchronous>, transform_indices = @transform_3, window_bounds = array<i64: 4, 64>}, {pipeline_mode = #tpu.pipeline_mode<synchronous>, transform_indices = @transform_4, window_bounds = array<i64: 1, 64>}, {transform_indices = @transform_5, window_bounds = array<i64: 1, 64, 256>}]} {
    %c0 = arith.constant 0 : index
    %c0_0 = arith.constant 0 : index
    %c0_1 = arith.constant 0 : index
    %0 = vector.load %arg1[%c0, %c0_0, %c0_1] : memref<1x64x256xf32, #tpu.memory_space<vmem>>, vector<1x64x256xf32>
    %cst = arith.constant dense<0.000000e+00> : vector<1x64xf32>
    %1 = vector.multi_reduction <add>, %0, %cst [2] : vector<1x64x256xf32> to vector<1x64xf32>
    %cst_2 = arith.constant 3.906250e-03 : f32
    %2 = vector.broadcast %cst_2 : f32 to vector<1x64xf32>
    %3 = arith.mulf %1, %2 : vector<1x64xf32>
    %c0_3 = arith.constant 0 : index
    %c0_4 = arith.constant 0 : index
    %4 = vector.load %arg2[%c0_3, %c0_4] : memref<4x64xf32, #tpu.memory_space<vmem>>, vector<4x64xf32>
    %5 = vector.broadcast %3 : vector<1x64xf32> to vector<4x64xf32>
    %6 = arith.mulf %5, %4 : vector<4x64xf32>
    %cst_5 = arith.constant dense<0.000000e+00> : vector<4xf32>
    %7 = vector.multi_reduction <add>, %6, %cst_5 [1] : vector<4x64xf32> to vector<4xf32>
    %8 = vector.shape_cast %7 : vector<4xf32> to vector<4x1xf32>
    %c0_6 = arith.constant 0 : index
    %c0_7 = arith.constant 0 : index
    %9 = vector.load %arg3[%c0_6, %c0_7] : memref<4x1xf32, #tpu.memory_space<vmem>>, vector<4x1xf32>
    %10 = arith.addf %8, %9 : vector<4x1xf32>
    %cst_8 = arith.constant 0.000000e+00 : f32
    %11 = vector.broadcast %cst_8 : f32 to vector<4x1xf32>
    %12 = arith.maximumf %10, %11 : vector<4x1xf32>
    %c0_9 = arith.constant 0 : index
    %c0_10 = arith.constant 0 : index
    %13 = vector.load %arg4[%c0_9, %c0_10] : memref<4x64xf32, #tpu.memory_space<vmem>>, vector<4x64xf32>
    %14 = vector.broadcast %12 : vector<4x1xf32> to vector<4x64xf32>
    %15 = arith.mulf %14, %13 : vector<4x64xf32>
    %cst_11 = arith.constant dense<0.000000e+00> : vector<64xf32>
    %16 = vector.multi_reduction <add>, %15, %cst_11 [0] : vector<4x64xf32> to vector<64xf32>
    %17 = vector.shape_cast %16 : vector<64xf32> to vector<1x64xf32>
    %c0_12 = arith.constant 0 : index
    %c0_13 = arith.constant 0 : index
    %18 = vector.load %arg5[%c0_12, %c0_13] : memref<1x64xf32, #tpu.memory_space<vmem>>, vector<1x64xf32>
    %19 = arith.addf %17, %18 : vector<1x64xf32>
    %cst_14 = arith.constant 0.000000e+00 : f32
    %20 = vector.broadcast %cst_14 : f32 to vector<1x64xf32>
    %21 = arith.subf %20, %19 : vector<1x64xf32>
    %22 = math.exp %21 : vector<1x64xf32>
    %cst_15 = arith.constant 1.000000e+00 : f32
    %23 = vector.broadcast %cst_15 : f32 to vector<1x64xf32>
    %24 = arith.addf %23, %22 : vector<1x64xf32>
    %cst_16 = arith.constant 1.000000e+00 : f32
    %25 = vector.broadcast %cst_16 : f32 to vector<1x64xf32>
    %26 = arith.divf %25, %24 : vector<1x64xf32>
    %c0_17 = arith.constant 0 : index
    %c0_18 = arith.constant 0 : index
    %c0_19 = arith.constant 0 : index
    %27 = vector.load %arg1[%c0_17, %c0_18, %c0_19] : memref<1x64x256xf32, #tpu.memory_space<vmem>>, vector<1x64x256xf32>
    %28 = vector.shape_cast %26 : vector<1x64xf32> to vector<1x64x1xf32>
    %29 = vector.broadcast %28 : vector<1x64x1xf32> to vector<1x64x256xf32>
    %30 = arith.mulf %27, %29 : vector<1x64x256xf32>
    %c0_20 = arith.constant 0 : index
    %c0_21 = arith.constant 0 : index
    %c0_22 = arith.constant 0 : index
    %31 = vector.load %arg6[%c0_20, %c0_21, %c0_22] : memref<1x64x256xf32, #tpu.memory_space<vmem>>, vector<1x64x256xf32>
    tpu.vector_store %arg6[%c0_20, %c0_21, %c0_22], %30 {strides = array<i32>} : memref<1x64x256xf32, #tpu.memory_space<vmem>>, vector<1x64x256xf32>,
    return
  }
  func.func @transform_0(%arg0: i32) -> (i32, i32, i32) {
    %c0_i32 = arith.constant 0 : i32
    %c0_i32_0 = arith.constant 0 : i32
    %c0_i32_1 = arith.constant 0 : i32
    return %arg0, %c0_i32, %c0_i32_0 : i32, i32, i32
  }
  func.func @transform_1(%arg0: i32) -> (i32, i32) {
    %c0_i32 = arith.constant 0 : i32
    %c0_i32_0 = arith.constant 0 : i32
    %c0_i32_1 = arith.constant 0 : i32
    return %c0_i32, %c0_i32_0 : i32, i32
  }
  func.func @transform_2(%arg0: i32) -> (i32, i32) {
    %c0_i32 = arith.constant 0 : i32
    %c0_i32_0 = arith.constant 0 : i32
    %c0_i32_1 = arith.constant 0 : i32
    return %c0_i32, %c0_i32_0 : i32, i32
  }
  func.func @transform_3(%arg0: i32) -> (i32, i32) {
    %c0_i32 = arith.constant 0 : i32
    %c0_i32_0 = arith.constant 0 : i32
    %c0_i32_1 = arith.constant 0 : i32
    return %c0_i32, %c0_i32_0 : i32, i32
  }
  func.func @transform_4(%arg0: i32) -> (i32, i32) {
    %c0_i32 = arith.constant 0 : i32
    %c0_i32_0 = arith.constant 0 : i32
    %c0_i32_1 = arith.constant 0 : i32
    return %c0_i32, %c0_i32_0 : i32, i32
  }
  func.func @transform_5(%arg0: i32) -> (i32, i32, i32) {
    %c0_i32 = arith.constant 0 : i32
    %c0_i32_0 = arith.constant 0 : i32
    %c0_i32_1 = arith.constant 0 : i32
    return %arg0, %c0_i32, %c0_i32_0 : i32, i32, i32
  }
}

</mosaic_0001>

<llo_original>
// kernel: tpu_custom_call.1
$region0: #{tpu_custom_call.1}
  #allocation0 [shape = 'u32[]', space=smem, size = 0x4, offset = 0x4, fixed_abs, tag = 'smem constant byte address 0x4 - core index']
  #allocation1 [shape = 'u32[144,128]{1,0:T(1,128)}', space=vmem, size = 0x12000, scoped, tag = 'internal scratch']
  %s0 = inlined_call_operand.hbm [shape: f32[2,64,256], index: 0, kind: input, shape index: {}]
  %s1 = inlined_call_operand.vmem [shape: f32[4,64], index: 1, kind: input, shape index: {}]
  %s2 = inlined_call_operand.vmem [shape: f32[4,1], index: 2, kind: input, shape index: {}]
  %s3 = inlined_call_operand.vmem [shape: f32[4,64], index: 3, kind: input, shape index: {}]
  %s4 = inlined_call_operand.vmem [shape: f32[1,64], index: 4, kind: input, shape index: {}]
  %s5 = inlined_call_operand.hbm [shape: f32[2,64,256], index: 5, kind: output, shape index: {}]
  %s6 = sld [smem:[#allocation0]]
  $region57: #{tpu_custom_call.1} parent=0
    _
  %s8 = ssub.s32 1, %s6
  %s9 = scalar_select 0, %s8, %s6
  $region1: #{tpu_custom_call.1} parent=0
    #allocation2 [shape = 'u8[131072]{0}', space=vmem, size = 0x20000, scoped, tag = 'input window, operand 0']
    #allocation3 [shape = 's32[2]{0}', space=sflag, size = 0x8, scoped, tag = 'scoped memory for tpu_custom_call.1']
    #allocation4 [shape = 's32[2]{0}', space=sflag, size = 0x8, scoped, tag = 'scoped memory for tpu_custom_call.1']
    #allocation5 [shape = 'u8[131072]{0}', space=vmem, size = 0x20000, scoped, tag = 'output window, operand 0']
    %10 = vsyncpa [#allocation3], 0
    %s11 = scalar_lea.sflag [#allocation3], 1
    %12 = vsyncpa %s11, 0
    %13 = vsyncpa [#allocation4], 0
    %s14 = scalar_lea.sflag [#allocation4], 1
    %15 = vsyncpa %s14, 0
    loop: start=0, step=1, limit=4
    $region2: #{tpu_custom_call.1} parent=1 // loop_pre_header
      _
    $region3: #{tpu_custom_call.1} parent=1 // loop_header
      %s17 = sphi 0, %s21
      %p18 = scmp.ge.s32.totalorder %s17, 4
      %s27 = sphi 0, %s29
      %s30 = sphi 0, %s27
      %s31 = sphi 0, %s30
      %s47 = sphi 0, %s31
      %s51 = sphi 0, %s51
      %s53 = sphi 0, %s51
      %s54 = sphi 0, %s53
      %s68 = sphi 0, %s54
      %s72 = sphi 0, %s72
      %s74 = sphi 0, %s72
      %s75 = sphi 0, %s74
      %s89 = sphi 0, %s75
      %s93 = sphi 0, %s93
      %s95 = sphi 0, %s93
      %s96 = sphi 0, %s95
      %s110 = sphi 0, %s96
      %s114 = sphi 0, %s114
      %s116 = sphi 0, %s114
      %s117 = sphi 0, %s116
      %s131 = sphi 0, %s117
      %s137 = sphi 0, %s139
      %s140 = sphi 0, %s137
      %s141 = sphi 0, %s140
      %s157 = sphi 0, %s141
    $region4: #{tpu_custom_call.1} parent=1 // loop_header_branch
      %20 = sbr.rel (%p18) target = $region8
    $region5: #{tpu_custom_call.1} parent=1 // loop_body
      %s22 = ssub.s32 %s17, 1
      %s23 = ssub.s32 %s17, 2
      %s24 = sadd.s32 %s17, 1
      %s25 = ssub.s32 %s17, %s24
      %p26 = scmp.eq.s32.totalorder %s25, 0
      %s28 = sadd.s32 %s27, 1
      %s29 = scalar_select %p26, %s27, %s28
      %p32 = pneg %p26
      %p33 = scmp.eq.s32.totalorder %s17, 1
      %p34 = por %p32, %p33
      %p35 = scmp.ne.s32.totalorder %s27, %s30
      %p36 = scmp.eq.s32.totalorder %s17, 0
      %p37 = por %p35, %p36
      %p38 = scmp.ne.s32.totalorder %s27, %s30
      %p39 = scmp.eq.s32.totalorder %s22, 1
      %p40 = por %p38, %p39
      %p41 = scmp.ne.s32.totalorder %s30, %s31
      %p42 = scmp.eq.s32.totalorder %s22, 0
      %p43 = por %p41, %p42
      %p44 = scmp.ne.s32.totalorder %s30, %s31
      %p45 = scmp.eq.s32.totalorder %s23, 1
      %p46 = por %p44, %p45
      %p48 = scmp.ne.s32.totalorder %s31, %s47
      %p49 = scmp.eq.s32.totalorder %s23, 0
      %p50 = por %p48, %p49
      %s52 = sadd.s32 %s51, 1
      %p55 = scmp.eq.s32.totalorder %s17, 1
      %p56 = scmp.ne.s32.totalorder %s51, %s53
      %p57 = scmp.eq.s32.totalorder %s17, 0
      %p58 = por %p56, %p57
      %p59 = scmp.ne.s32.totalorder %s51, %s53
      %p60 = scmp.eq.s32.totalorder %s22, 1
      %p61 = por %p59, %p60
      %p62 = scmp.ne.s32.totalorder %s53, %s54
      %p63 = scmp.eq.s32.totalorder %s22, 0
      %p64 = por %p62, %p63
      %p65 = scmp.ne.s32.totalorder %s53, %s54
      %p66 = scmp.eq.s32.totalorder %s23, 1
      %p67 = por %p65, %p66
      %p69 = scmp.ne.s32.totalorder %s54, %s68
      %p70 = scmp.eq.s32.totalorder %s23, 0
      %p71 = por %p69, %p70
      %s73 = sadd.s32 %s72, 1
      %p76 = scmp.eq.s32.totalorder %s17, 1
      %p77 = scmp.ne.s32.totalorder %s72, %s74
      %p78 = scmp.eq.s32.totalorder %s17, 0
      %p79 = por %p77, %p78
      %p80 = scmp.ne.s32.totalorder %s72, %s74
      %p81 = scmp.eq.s32.totalorder %s22, 1
      %p82 = por %p80, %p81
      %p83 = scmp.ne.s32.totalorder %s74, %s75
      %p84 = scmp.eq.s32.totalorder %s22, 0
      %p85 = por %p83, %p84
      %p86 = scmp.ne.s32.totalorder %s74, %s75
      %p87 = scmp.eq.s32.totalorder %s23, 1
      %p88 = por %p86, %p87
      %p90 = scmp.ne.s32.totalorder %s75, %s89
      %p91 = scmp.eq.s32.totalorder %s23, 0
      %p92 = por %p90, %p91
      %s94 = sadd.s32 %s93, 1
      %p97 = scmp.eq.s32.totalorder %s17, 1
      %p98 = scmp.ne.s32.totalorder %s93, %s95
      %p99 = scmp.eq.s32.totalorder %s17, 0
      %p100 = por %p98, %p99
      %p101 = scmp.ne.s32.totalorder %s93, %s95
      %p102 = scmp.eq.s32.totalorder %s22, 1
      %p103 = por %p101, %p102
      %p104 = scmp.ne.s32.totalorder %s95, %s96
      %p105 = scmp.eq.s32.totalorder %s22, 0
      %p106 = por %p104, %p105
      %p107 = scmp.ne.s32.totalorder %s95, %s96
      %p108 = scmp.eq.s32.totalorder %s23, 1
      %p109 = por %p107, %p108
      %p111 = scmp.ne.s32.totalorder %s96, %s110
      %p112 = scmp.eq.s32.totalorder %s23, 0
      %p113 = por %p111, %p112
      %s115 = sadd.s32 %s114, 1
      %p118 = scmp.eq.s32.totalorder %s17, 1
      %p119 = scmp.ne.s32.totalorder %s114, %s116
      %p120 = scmp.eq.s32.totalorder %s17, 0
      %p121 = por %p119, %p120
      %p122 = scmp.ne.s32.totalorder %s114, %s116
      %p123 = scmp.eq.s32.totalorder %s22, 1
      %p124 = por %p122, %p123
      %p125 = scmp.ne.s32.totalorder %s116, %s117
      %p126 = scmp.eq.s32.totalorder %s22, 0
      %p127 = por %p125, %p126
      %p128 = scmp.ne.s32.totalorder %s116, %s117
      %p129 = scmp.eq.s32.totalorder %s23, 1
      %p130 = por %p128, %p129
      %p132 = scmp.ne.s32.totalorder %s117, %s131
      %p133 = scmp.eq.s32.totalorder %s23, 0
      %p134 = por %p132, %p133
      %s135 = ssub.s32 %s17, %s24
      %p136 = scmp.eq.s32.totalorder %s135, 0
      %s138 = sadd.s32 %s137, 1
      %s139 = scalar_select %p136, %s137, %s138
      %p142 = pneg %p136
      %p143 = scmp.eq.s32.totalorder %s17, 1
      %p144 = por %p142, %p143
      %p145 = scmp.ne.s32.totalorder %s137, %s140
      %p146 = scmp.eq.s32.totalorder %s17, 0
      %p147 = por %p145, %p146
      %p148 = scmp.ne.s32.totalorder %s137, %s140
      %p149 = scmp.eq.s32.totalorder %s22, 1
      %p150 = por %p148, %p149
      %p151 = scmp.ne.s32.totalorder %s140, %s141
      %p152 = scmp.eq.s32.totalorder %s22, 0
      %p153 = por %p151, %p152
      %p154 = scmp.ne.s32.totalorder %s140, %s141
      %p155 = scmp.eq.s32.totalorder %s23, 1
      %p156 = por %p154, %p155
      %p158 = scmp.ne.s32.totalorder %s141, %s157
      %p159 = scmp.eq.s32.totalorder %s23, 0
      %p160 = por %p158, %p159
      %p161 = scmp.le.s32.totalorder 1, %s17
      %p162 = scmp.lt.s32.totalorder %s17, 3
      %p163 = pnand %p161, %p162
      %p164 = pneg %p163
      // Predicated region
      $region9: #{tpu_custom_call.1} parent=5 // pred_check
        _
      $region10: #{tpu_custom_call.1} parent=5 // pred_check_branch
        %166 = sbr.rel (%p163) target = $region12
      $region11: #{tpu_custom_call.1} parent=5 // pred_region
        %s167 = ssub.s32 %s17, 1
        // Predicated region
        $region13: #{tpu_custom_call.1} parent=11 // pred_check
          %p168 = pneg %p64
        $region14: #{tpu_custom_call.1} parent=11 // pred_check_branch
          %170 = sbr.rel (%p168) target = $region16
        $region15: #{tpu_custom_call.1} parent=11 // pred_region
          _
        $region16: #{tpu_custom_call.1} parent=11 // pred_fallthru
          _
        // Predicated region
        $region17: #{tpu_custom_call.1} parent=11 // pred_check
          %p171 = pneg %p85
        $region18: #{tpu_custom_call.1} parent=11 // pred_check_branch
          %173 = sbr.rel (%p171) target = $region20
        $region19: #{tpu_custom_call.1} parent=11 // pred_region
          _
        $region20: #{tpu_custom_call.1} parent=11 // pred_fallthru
          _
        // Predicated region
        $region21: #{tpu_custom_call.1} parent=11 // pred_check
          %p174 = pneg %p106
        $region22: #{tpu_custom_call.1} parent=11 // pred_check_branch
          %176 = sbr.rel (%p174) target = $region24
        $region23: #{tpu_custom_call.1} parent=11 // pred_region
          _
        $region24: #{tpu_custom_call.1} parent=11 // pred_fallthru
          _
        // Predicated region
        $region25: #{tpu_custom_call.1} parent=11 // pred_check
          %p177 = pneg %p127
        $region26: #{tpu_custom_call.1} parent=11 // pred_check_branch
          %179 = sbr.rel (%p177) target = $region28
        $region27: #{tpu_custom_call.1} parent=11 // pred_region
          _
        $region28: #{tpu_custom_call.1} parent=11 // pred_fallthru
          _
      $region12: #{tpu_custom_call.1} parent=5 // pred_fallthru
        _
      %p180 = scmp.lt.s32.totalorder %s17, 2
      // Predicated region
      $region29: #{tpu_custom_call.1} parent=5 // pred_check
        %p181 = pneg %p180
      $region30: #{tpu_custom_call.1} parent=5 // pred_check_branch
        %183 = sbr.rel (%p181) target = $region32
      $region31: #{tpu_custom_call.1} parent=5 // pred_region
        // Predicated region
        $region33: #{tpu_custom_call.1} parent=31 // pred_check
          %p184 = pneg %p37
        $region34: #{tpu_custom_call.1} parent=31 // pred_check_branch
          %186 = sbr.rel (%p184) target = $region36
        $region35: #{tpu_custom_call.1} parent=31 // pred_region
          %s187 = sand.u32 %s27, 1
          %s188 = scalar_lea.sflag [#allocation3], %s187
          %s189 = sand.u32 %s27, 1
          %s190 = smul.addr %s189, 128
          %s191 = scalar_lea.vmem [#allocation2], %s190
          %s193 = ssub.s32 2048, 2048
          %194 = vsyncadd %s188, %s193
          %s195 = smul.addr %s17, 16
          %s196 = smul.addr %s195, 128
          %s197 = scalar_lea.hbm %s0, %s196
          %s198 = sshll.u32 %s191, 4
          %s199 = int_to_ptr.vmem [resolvable:$true] %s198
          %204 = dma.hbm_to_vmem [thread:$0]  %s197, 2048, %s199, %s188, 256, 256, 16
        $region36: #{tpu_custom_call.1} parent=31 // pred_fallthru
          _
      $region32: #{tpu_custom_call.1} parent=5 // pred_fallthru
        _
      %p205 = scmp.le.s32.totalorder 1, %s17
      %p206 = scmp.lt.s32.totalorder %s17, 3
      %p207 = pnand %p205, %p206
      %p208 = pneg %p207
      // Predicated region
      $region37: #{tpu_custom_call.1} parent=5 // pred_check
        _
      $region38: #{tpu_custom_call.1} parent=5 // pred_check_branch
        %210 = sbr.rel (%p207) target = $region40
      $region39: #{tpu_custom_call.1} parent=5 // pred_region
        %s211 = ssub.s32 %s17, 1
        %s212 = sand.u32 %s30, 1
        %s213 = scalar_lea.sflag [#allocation3], %s212
        %s214 = sand.u32 %s30, 1
        %s215 = smul.addr %s214, 128
        %s216 = scalar_lea.vmem [#allocation2], %s215
        // Predicated region
        $region41: #{tpu_custom_call.1} parent=39 // pred_check
          %p217 = pneg %p43
        $region42: #{tpu_custom_call.1} parent=39 // pred_check_branch
          %219 = sbr.rel (%p217) target = $region44
        $region43: #{tpu_custom_call.1} parent=39 // pred_region
          %220 = dma.done %s213, 2048
        $region44: #{tpu_custom_call.1} parent=39 // pred_fallthru
          _
        %s221 = sand.u32 %s30, 1
        %s222 = scalar_lea.sflag [#allocation3], %s221
        %s223 = sand.u32 %s30, 1
        %s224 = smul.addr %s223, 128
        %s225 = scalar_lea.vmem [#allocation2], %s224
        %p226 = pneg %p43
        %p227 = pneg %p40
        %p228 = pneg %p64
        %p229 = pneg %p61
        %p230 = pneg %p85
        %p231 = pneg %p82
        %p232 = pneg %p106
        %p233 = pneg %p103
        %p234 = pneg %p127
        %p235 = pneg %p124
        %p236 = pneg %p153
        %p237 = pneg %p150
        %s238 = sand.u32 %s140, 1
        %s239 = scalar_lea.sflag [#allocation4], %s238
        %s240 = sand.u32 %s140, 1
        %s241 = smul.addr %s240, 128
        %s242 = scalar_lea.vmem [#allocation5], %s241
        %v243 = vld [vmem:[%s216] sm:$0xff]
        %v244 = vld [vmem:[%s216 + $0x8] sm:$0xff]
        %v245 = vld [vmem:[%s216 + $0x10] sm:$0xff]
        %v246 = vld [vmem:[%s216 + $0x18] sm:$0xff]
        %v247 = vld [vmem:[%s216 + $0x20] sm:$0xff]
        %v248 = vld [vmem:[%s216 + $0x28] sm:$0xff]
        %v249 = vld [vmem:[%s216 + $0x30] sm:$0xff]
        %v250 = vld [vmem:[%s216 + $0x38] sm:$0xff]
        %v251 = vld [vmem:[%s216 + $0x40] sm:$0xff]
        %v252 = vld [vmem:[%s216 + $0x48] sm:$0xff]
        %v253 = vld [vmem:[%s216 + $0x50] sm:$0xff]
        %v254 = vld [vmem:[%s216 + $0x58] sm:$0xff]
        %v255 = vld [vmem:[%s216 + $0x60] sm:$0xff]
        %v256 = vld [vmem:[%s216 + $0x68] sm:$0xff]
        %v257 = vld [vmem:[%s216 + $0x70] sm:$0xff]
        %v258 = vld [vmem:[%s216 + $0x78] sm:$0xff]
        %v259 = vadd.f32 %v243, %v244
        %260 = vadd.xlane.f32.xlu0 %v259
        %v261 = vpop.xlane.xlu0 %260
        %v262 = vadd.f32 %v245, %v246
        %263 = vadd.xlane.f32.xlu0 %v262
        %v264 = vpop.xlane.xlu0 %263
        %v265 = vadd.f32 %v247, %v248
        %266 = vadd.xlane.f32.xlu0 %v265
        %v267 = vpop.xlane.xlu0 %266
        %v268 = vadd.f32 %v249, %v250
        %269 = vadd.xlane.f32.xlu0 %v268
        %v270 = vpop.xlane.xlu0 %269
        %v271 = vadd.f32 %v251, %v252
        %272 = vadd.xlane.f32.xlu0 %v271
        %v273 = vpop.xlane.xlu0 %272
        %v274 = vadd.f32 %v253, %v254
        %275 = vadd.xlane.f32.xlu0 %v274
        %v276 = vpop.xlane.xlu0 %275
        %v277 = vadd.f32 %v255, %v256
        %278 = vadd.xlane.f32.xlu0 %v277
        %v279 = vpop.xlane.xlu0 %278
        %v280 = vadd.f32 %v257, %v258
        %281 = vadd.xlane.f32.xlu0 %v280
        %v282 = vpop.xlane.xlu0 %281
        %v283 = vmul.f32 %v261, 0.00390625
        %v284 = vmul.f32 %v264, 0.00390625
        %v285 = vmul.f32 %v267, 0.00390625
        %v286 = vmul.f32 %v270, 0.00390625
        %v287 = vmul.f32 %v273, 0.00390625
        %v288 = vmul.f32 %v276, 0.00390625
        %v289 = vmul.f32 %v279, 0.00390625
        %v290 = vmul.f32 %v282, 0.00390625
        %v291 = vld [vmem:[%s1] sm:$0xf]
        %v293 = vlaneseq
        %v294 = vshrl.u32 %v293, 7
        %v295 = vsub.s32 0, %v294
        %v296 = vrot.slane %v291, %v295
        %298 = vbcast.lane.b32.xlu0 %v296, 256
        %v299 = vpop.permute.xlu0 %298
        %s301 = sor.u32 256, 8
        %302 = vbcast.lane.b32.xlu0 %v296, %s301
        %v303 = vpop.permute.xlu0 %302
        %s305 = sor.u32 256, 16
        %306 = vbcast.lane.b32.xlu0 %v296, %s305
        %v307 = vpop.permute.xlu0 %306
        %s309 = sor.u32 256, 24
        %310 = vbcast.lane.b32.xlu0 %v296, %s309
        %v311 = vpop.permute.xlu0 %310
        %s313 = sor.u32 256, 32
        %314 = vbcast.lane.b32.xlu0 %v296, %s313
        %v315 = vpop.permute.xlu0 %314
        %s317 = sor.u32 256, 40
        %318 = vbcast.lane.b32.xlu0 %v296, %s317
        %v319 = vpop.permute.xlu0 %318
        %s321 = sor.u32 256, 48
        %322 = vbcast.lane.b32.xlu0 %v296, %s321
        %v323 = vpop.permute.xlu0 %322
        %s325 = sor.u32 256, 56
        %326 = vbcast.lane.b32.xlu0 %v296, %s325
        %v327 = vpop.permute.xlu0 %326
        %v328 = vlaneseq
        %v329 = vshrl.u32 %v328, 7
        %v330 = vsub.s32 1, %v329
        %v331 = vrot.slane %v291, %v330
        %333 = vbcast.lane.b32.xlu0 %v331, 256
        %v334 = vpop.permute.xlu0 %333
        %s336 = sor.u32 256, 8
        %337 = vbcast.lane.b32.xlu0 %v331, %s336
        %v338 = vpop.permute.xlu0 %337
        %s340 = sor.u32 256, 16
        %341 = vbcast.lane.b32.xlu0 %v331, %s340
        %v342 = vpop.permute.xlu0 %341
        %s344 = sor.u32 256, 24
        %345 = vbcast.lane.b32.xlu0 %v331, %s344
        %v346 = vpop.permute.xlu0 %345
        %s348 = sor.u32 256, 32
        %349 = vbcast.lane.b32.xlu0 %v331, %s348
        %v350 = vpop.permute.xlu0 %349
        %s352 = sor.u32 256, 40
        %353 = vbcast.lane.b32.xlu0 %v331, %s352
        %v354 = vpop.permute.xlu0 %353
        %s356 = sor.u32 256, 48
        %357 = vbcast.lane.b32.xlu0 %v331, %s356
        %v358 = vpop.permute.xlu0 %357
        %s360 = sor.u32 256, 56
        %361 = vbcast.lane.b32.xlu0 %v331, %s360
        %v362 = vpop.permute.xlu0 %361
        %v363 = vlaneseq
        %v364 = vshrl.u32 %v363, 7
        %v365 = vsub.s32 2, %v364
        %v366 = vrot.slane %v291, %v365
        %368 = vbcast.lane.b32.xlu0 %v366, 256
        %v369 = vpop.permute.xlu0 %368
        %s371 = sor.u32 256, 8
        %372 = vbcast.lane.b32.xlu0 %v366, %s371
        %v373 = vpop.permute.xlu0 %372
        %s375 = sor.u32 256, 16
        %376 = vbcast.lane.b32.xlu0 %v366, %s375
        %v377 = vpop.permute.xlu0 %376
        %s379 = sor.u32 256, 24
        %380 = vbcast.lane.b32.xlu0 %v366, %s379
        %v381 = vpop.permute.xlu0 %380
        %s383 = sor.u32 256, 32
        %384 = vbcast.lane.b32.xlu0 %v366, %s383
        %v385 = vpop.permute.xlu0 %384
        %s387 = sor.u32 256, 40
        %388 = vbcast.lane.b32.xlu0 %v366, %s387
        %v389 = vpop.permute.xlu0 %388
        %s391 = sor.u32 256, 48
        %392 = vbcast.lane.b32.xlu0 %v366, %s391
        %v393 = vpop.permute.xlu0 %392
        %s395 = sor.u32 256, 56
        %396 = vbcast.lane.b32.xlu0 %v366, %s395
        %v397 = vpop.permute.xlu0 %396
        %v398 = vlaneseq
        %v399 = vshrl.u32 %v398, 7
        %v400 = vsub.s32 3, %v399
        %v401 = vrot.slane %v291, %v400
        %403 = vbcast.lane.b32.xlu0 %v401, 256
        %v404 = vpop.permute.xlu0 %403
        %s406 = sor.u32 256, 8
        %407 = vbcast.lane.b32.xlu0 %v401, %s406
        %v408 = vpop.permute.xlu0 %407
        %s410 = sor.u32 256, 16
        %411 = vbcast.lane.b32.xlu0 %v401, %s410
        %v412 = vpop.permute.xlu0 %411
        %s414 = sor.u32 256, 24
        %415 = vbcast.lane.b32.xlu0 %v401, %s414
        %v416 = vpop.permute.xlu0 %415
        %s418 = sor.u32 256, 32
        %419 = vbcast.lane.b32.xlu0 %v401, %s418
        %v420 = vpop.permute.xlu0 %419
        %s422 = sor.u32 256, 40
        %423 = vbcast.lane.b32.xlu0 %v401, %s422
        %v424 = vpop.permute.xlu0 %423
        %s426 = sor.u32 256, 48
        %427 = vbcast.lane.b32.xlu0 %v401, %s426
        %v428 = vpop.permute.xlu0 %427
        %s430 = sor.u32 256, 56
        %431 = vbcast.lane.b32.xlu0 %v401, %s430
        %v432 = vpop.permute.xlu0 %431
        %v465 = vmul.f32 %v283, %v299
        %v466 = vmul.f32 %v284, %v303
        %v467 = vmul.f32 %v285, %v307
        %v468 = vmul.f32 %v286, %v311
        %v469 = vmul.f32 %v287, %v315
        %v470 = vmul.f32 %v288, %v319
        %v471 = vmul.f32 %v289, %v323
        %v472 = vmul.f32 %v290, %v327
        %v473 = vmul.f32 %v283, %v334
        %v474 = vmul.f32 %v284, %v338
        %v475 = vmul.f32 %v285, %v342
        %v476 = vmul.f32 %v286, %v346
        %v477 = vmul.f32 %v287, %v350
        %v478 = vmul.f32 %v288, %v354
        %v479 = vmul.f32 %v289, %v358
        %v480 = vmul.f32 %v290, %v362
        %v481 = vmul.f32 %v283, %v369
        %v482 = vmul.f32 %v284, %v373
        %v483 = vmul.f32 %v285, %v377
        %v484 = vmul.f32 %v286, %v381
        %v485 = vmul.f32 %v287, %v385
        %v486 = vmul.f32 %v288, %v389
        %v487 = vmul.f32 %v289, %v393
        %v488 = vmul.f32 %v290, %v397
        %v489 = vmul.f32 %v283, %v404
        %v490 = vmul.f32 %v284, %v408
        %v491 = vmul.f32 %v285, %v412
        %v492 = vmul.f32 %v286, %v416
        %v493 = vmul.f32 %v287, %v420
        %v494 = vmul.f32 %v288, %v424
        %v495 = vmul.f32 %v289, %v428
        %v496 = vmul.f32 %v290, %v432
        %529 = vset.pattern.permute.xlu0 0
        %530 = vperm.xlu0 %529, %v465
        %v531 = vpop.permute.xlu0 %530
        %532 = vset.pattern.permute.xlu0 0
        %533 = vperm.xlu0 %532, %v466
        %v534 = vpop.permute.xlu0 %533
        %535 = vset.pattern.permute.xlu0 0
        %536 = vperm.xlu0 %535, %v467
        %v537 = vpop.permute.xlu0 %536
        %538 = vset.pattern.permute.xlu0 0
        %539 = vperm.xlu0 %538, %v468
        %v540 = vpop.permute.xlu0 %539
        %541 = vset.pattern.permute.xlu0 0
        %542 = vperm.xlu0 %541, %v469
        %v543 = vpop.permute.xlu0 %542
        %544 = vset.pattern.permute.xlu0 0
        %545 = vperm.xlu0 %544, %v470
        %v546 = vpop.permute.xlu0 %545
        %547 = vset.pattern.permute.xlu0 0
        %548 = vperm.xlu0 %547, %v471
        %v549 = vpop.permute.xlu0 %548
        %550 = vset.pattern.permute.xlu0 0
        %551 = vperm.xlu0 %550, %v472
        %v552 = vpop.permute.xlu0 %551
        %553 = vset.pattern.permute.xlu0 0
        %554 = vperm.xlu0 %553, %v473
        %v555 = vpop.permute.xlu0 %554
        %556 = vset.pattern.permute.xlu0 0
        %557 = vperm.xlu0 %556, %v474
        %v558 = vpop.permute.xlu0 %557
        %559 = vset.pattern.permute.xlu0 0
        %560 = vperm.xlu0 %559, %v475
        %v561 = vpop.permute.xlu0 %560
        %562 = vset.pattern.permute.xlu0 0
        %563 = vperm.xlu0 %562, %v476
        %v564 = vpop.permute.xlu0 %563
        %565 = vset.pattern.permute.xlu0 0
        %566 = vperm.xlu0 %565, %v477
        %v567 = vpop.permute.xlu0 %566
        %568 = vset.pattern.permute.xlu0 0
        %569 = vperm.xlu0 %568, %v478
        %v570 = vpop.permute.xlu0 %569
        %571 = vset.pattern.permute.xlu0 0
        %572 = vperm.xlu0 %571, %v479
        %v573 = vpop.permute.xlu0 %572
        %574 = vset.pattern.permute.xlu0 0
        %575 = vperm.xlu0 %574, %v480
        %v576 = vpop.permute.xlu0 %575
        %577 = vset.pattern.permute.xlu0 0
        %578 = vperm.xlu0 %577, %v481
        %v579 = vpop.permute.xlu0 %578
        %580 = vset.pattern.permute.xlu0 0
        %581 = vperm.xlu0 %580, %v482
        %v582 = vpop.permute.xlu0 %581
        %583 = vset.pattern.permute.xlu0 0
        %584 = vperm.xlu0 %583, %v483
        %v585 = vpop.permute.xlu0 %584
        %586 = vset.pattern.permute.xlu0 0
        %587 = vperm.xlu0 %586, %v484
        %v588 = vpop.permute.xlu0 %587
        %589 = vset.pattern.permute.xlu0 0
        %590 = vperm.xlu0 %589, %v485
        %v591 = vpop.permute.xlu0 %590
        %592 = vset.pattern.permute.xlu0 0
        %593 = vperm.xlu0 %592, %v486
        %v594 = vpop.permute.xlu0 %593
        %595 = vset.pattern.permute.xlu0 0
        %596 = vperm.xlu0 %595, %v487
        %v597 = vpop.permute.xlu0 %596
        %598 = vset.pattern.permute.xlu0 0
        %599 = vperm.xlu0 %598, %v488
        %v600 = vpop.permute.xlu0 %599
        %601 = vset.pattern.permute.xlu0 0
        %602 = vperm.xlu0 %601, %v489
        %v603 = vpop.permute.xlu0 %602
        %604 = vset.pattern.permute.xlu0 0
        %605 = vperm.xlu0 %604, %v490
        %v606 = vpop.permute.xlu0 %605
        %607 = vset.pattern.permute.xlu0 0
        %608 = vperm.xlu0 %607, %v491
        %v609 = vpop.permute.xlu0 %608
        %610 = vset.pattern.permute.xlu0 0
        %611 = vperm.xlu0 %610, %v492
        %v612 = vpop.permute.xlu0 %611
        %613 = vset.pattern.permute.xlu0 0
        %614 = vperm.xlu0 %613, %v493
        %v615 = vpop.permute.xlu0 %614
        %616 = vset.pattern.permute.xlu0 0
        %617 = vperm.xlu0 %616, %v494
        %v618 = vpop.permute.xlu0 %617
        %619 = vset.pattern.permute.xlu0 0
        %620 = vperm.xlu0 %619, %v495
        %v621 = vpop.permute.xlu0 %620
        %622 = vset.pattern.permute.xlu0 0
        %623 = vperm.xlu0 %622, %v496
        %v624 = vpop.permute.xlu0 %623
        %v625 = vlaneseq
        %v626 = vand.u32 %v625, 127
        %v627 = vlaneseq
        %v628 = vshrl.u32 %v627, 7
        %v629 = vsub.s32 %v626, %v628
        %v630 = vrot.slane %v531, %v629
        %v631 = vadd.s32 %v626, 4294967288
        %v632 = vlaneseq
        %v633 = vshrl.u32 %v632, 7
        %v634 = vsub.s32 %v631, %v633
        %v635 = vrot.slane %v534, %v634
        %vm636 = vcmask 130112
        %v637 = vsel %vm636, %v635, %v630
        %v638 = vadd.s32 %v626, 4294967280
        %v639 = vlaneseq
        %v640 = vshrl.u32 %v639, 7
        %v641 = vsub.s32 %v638, %v640
        %v642 = vrot.slane %v537, %v641
        %vm643 = vcmask 195712
        %v644 = vsel %vm643, %v642, %v637
        %v645 = vadd.s32 %v626, 4294967272
        %v646 = vlaneseq
        %v647 = vshrl.u32 %v646, 7
        %v648 = vsub.s32 %v645, %v647
        %v649 = vrot.slane %v540, %v648
        %vm650 = vcmask 261312
        %v651 = vsel %vm650, %v649, %v644
        %v652 = vadd.s32 %v626, 4294967264
        %v653 = vlaneseq
        %v654 = vshrl.u32 %v653, 7
        %v655 = vsub.s32 %v652, %v654
        %v656 = vrot.slane %v543, %v655
        %vm657 = vcmask 326912
        %v658 = vsel %vm657, %v656, %v651
        %v659 = vadd.s32 %v626, 4294967256
        %v660 = vlaneseq
        %v661 = vshrl.u32 %v660, 7
        %v662 = vsub.s32 %v659, %v661
        %v663 = vrot.slane %v546, %v662
        %vm664 = vcmask 392512
        %v665 = vsel %vm664, %v663, %v658
        %v666 = vadd.s32 %v626, 4294967248
        %v667 = vlaneseq
        %v668 = vshrl.u32 %v667, 7
        %v669 = vsub.s32 %v666, %v668
        %v670 = vrot.slane %v549, %v669
        %vm671 = vcmask 458112
        %v672 = vsel %vm671, %v670, %v665
        %v673 = vadd.s32 %v626, 4294967240
        %v674 = vlaneseq
        %v675 = vshrl.u32 %v674, 7
        %v676 = vsub.s32 %v673, %v675
        %v677 = vrot.slane %v552, %v676
        %vm678 = vcmask 523712
        %v679 = vsel %vm678, %v677, %v672
        %v680 = vlaneseq
        %v681 = vshrl.u32 %v680, 7
        %v682 = vsub.s32 %v626, %v681
        %v683 = vrot.slane %v555, %v682
        %v684 = vlaneseq
        %v685 = vshrl.u32 %v684, 7
        %v686 = vsub.s32 %v631, %v685
        %v687 = vrot.slane %v558, %v686
        %v688 = vsel %vm636, %v687, %v683
        %v689 = vlaneseq
        %v690 = vshrl.u32 %v689, 7
        %v691 = vsub.s32 %v638, %v690
        %v692 = vrot.slane %v561, %v691
        %v693 = vsel %vm643, %v692, %v688
        %v694 = vlaneseq
        %v695 = vshrl.u32 %v694, 7
        %v696 = vsub.s32 %v645, %v695
        %v697 = vrot.slane %v564, %v696
        %v698 = vsel %vm650, %v697, %v693
        %v699 = vlaneseq
        %v700 = vshrl.u32 %v699, 7
        %v701 = vsub.s32 %v652, %v700
        %v702 = vrot.slane %v567, %v701
        %v703 = vsel %vm657, %v702, %v698
        %v704 = vlaneseq
        %v705 = vshrl.u32 %v704, 7
        %v706 = vsub.s32 %v659, %v705
        %v707 = vrot.slane %v570, %v706
        %v708 = vsel %vm664, %v707, %v703
        %v709 = vlaneseq
        %v710 = vshrl.u32 %v709, 7
        %v711 = vsub.s32 %v666, %v710
        %v712 = vrot.slane %v573, %v711
        %v713 = vsel %vm671, %v712, %v708
        %v714 = vlaneseq
        %v715 = vshrl.u32 %v714, 7
        %v716 = vsub.s32 %v673, %v715
        %v717 = vrot.slane %v576, %v716
        %v718 = vsel %vm678, %v717, %v713
        %v719 = vlaneseq
        %v720 = vshrl.u32 %v719, 7
        %v721 = vsub.s32 %v626, %v720
        %v722 = vrot.slane %v579, %v721
        %v723 = vlaneseq
        %v724 = vshrl.u32 %v723, 7
        %v725 = vsub.s32 %v631, %v724
        %v726 = vrot.slane %v582, %v725
        %v727 = vsel %vm636, %v726, %v722
        %v728 = vlaneseq
        %v729 = vshrl.u32 %v728, 7
        %v730 = vsub.s32 %v638, %v729
        %v731 = vrot.slane %v585, %v730
        %v732 = vsel %vm643, %v731, %v727
        %v733 = vlaneseq
        %v734 = vshrl.u32 %v733, 7
        %v735 = vsub.s32 %v645, %v734
        %v736 = vrot.slane %v588, %v735
        %v737 = vsel %vm650, %v736, %v732
        %v738 = vlaneseq
        %v739 = vshrl.u32 %v738, 7
        %v740 = vsub.s32 %v652, %v739
        %v741 = vrot.slane %v591, %v740
        %v742 = vsel %vm657, %v741, %v737
        %v743 = vlaneseq
        %v744 = vshrl.u32 %v743, 7
        %v745 = vsub.s32 %v659, %v744
        %v746 = vrot.slane %v594, %v745
        %v747 = vsel %vm664, %v746, %v742
        %v748 = vlaneseq
        %v749 = vshrl.u32 %v748, 7
        %v750 = vsub.s32 %v666, %v749
        %v751 = vrot.slane %v597, %v750
        %v752 = vsel %vm671, %v751, %v747
        %v753 = vlaneseq
        %v754 = vshrl.u32 %v753, 7
        %v755 = vsub.s32 %v673, %v754
        %v756 = vrot.slane %v600, %v755
        %v757 = vsel %vm678, %v756, %v752
        %v758 = vlaneseq
        %v759 = vshrl.u32 %v758, 7
        %v760 = vsub.s32 %v626, %v759
        %v761 = vrot.slane %v603, %v760
        %v762 = vlaneseq
        %v763 = vshrl.u32 %v762, 7
        %v764 = vsub.s32 %v631, %v763
        %v765 = vrot.slane %v606, %v764
        %v766 = vsel %vm636, %v765, %v761
        %v767 = vlaneseq
        %v768 = vshrl.u32 %v767, 7
        %v769 = vsub.s32 %v638, %v768
        %v770 = vrot.slane %v609, %v769
        %v771 = vsel %vm643, %v770, %v766
        %v772 = vlaneseq
        %v773 = vshrl.u32 %v772, 7
        %v774 = vsub.s32 %v645, %v773
        %v775 = vrot.slane %v612, %v774
        %v776 = vsel %vm650, %v775, %v771
        %v777 = vlaneseq
        %v778 = vshrl.u32 %v777, 7
        %v779 = vsub.s32 %v652, %v778
        %v780 = vrot.slane %v615, %v779
        %v781 = vsel %vm657, %v780, %v776
        %v782 = vlaneseq
        %v783 = vshrl.u32 %v782, 7
        %v784 = vsub.s32 %v659, %v783
        %v785 = vrot.slane %v618, %v784
        %v786 = vsel %vm664, %v785, %v781
        %v787 = vlaneseq
        %v788 = vshrl.u32 %v787, 7
        %v789 = vsub.s32 %v666, %v788
        %v790 = vrot.slane %v621, %v789
        %v791 = vsel %vm671, %v790, %v786
        %v792 = vlaneseq
        %v793 = vshrl.u32 %v792, 7
        %v794 = vsub.s32 %v673, %v793
        %v795 = vrot.slane %v624, %v794
        %v796 = vsel %vm678, %v795, %v791
        %vm797 = vcmask 1041409
        %v798 = vsel %vm797, %v718, %v679
        %vm799 = vcmask 1042434
        %v800 = vsel %vm799, %v757, %v798
        %vm801 = vcmask 1043459
        %v802 = vsel %vm801, %v796, %v800
        %vm804 = vcmask 519168
        %v805 = vsel %vm804, %v802, 0.0
        %806 = vadd.xlane.f32.xlu0 %v805
        %v807 = vpop.xlane.xlu0 %806
        %v808 = vld [vmem:[%s2] sm:$0xf]
        %v809 = vadd.f32 %v807, %v808
        %v810 = vmax.f32 %v809, 0.0
        %v811 = vld [vmem:[%s3] sm:$0xf]
        %813 = vset.pattern.permute.xlu0 0
        %814 = vperm.xlu0 %813, %v810
        %v815 = vpop.permute.xlu0 %814
        %v817 = vmul.f32 %v815, %v811
        %v818 = vsel %vm804, %v817, 0.0
        %v819 = vrot.slane %v818, 4
        %v820 = vadd.f32 %v818, %v819
        %v821 = vrot.slane %v820, 2
        %v822 = vadd.f32 %v820, %v821
        %v823 = vrot.slane %v822, 1
        %v824 = vadd.f32 %v822, %v823
        %v825 = vld [vmem:[%s4] sm:$0x1]
        %v826 = vadd.f32 %v824, %v825
        %v827 = vsub.f32 0.0, %v826
        %v828 = vmul.f32 %v827, 1.442695
        %v829 = vpow.pop %v828
        %v830 = vadd.f32 %v829, 1.0
        %v831 = vrcp.pop %v830
        %v832 = vmul.f32 1.0, %v831
        %v833 = vlaneseq
        %v834 = vshrl.u32 %v833, 7
        %v835 = vsub.s32 0, %v834
        %v836 = vrot.slane %v832, %v835
        %838 = vbcast.lane.b32.xlu0 %v836, 256
        %v839 = vpop.permute.xlu0 %838
        %s841 = sor.u32 256, 8
        %842 = vbcast.lane.b32.xlu0 %v836, %s841
        %v843 = vpop.permute.xlu0 %842
        %s845 = sor.u32 256, 16
        %846 = vbcast.lane.b32.xlu0 %v836, %s845
        %v847 = vpop.permute.xlu0 %846
        %s849 = sor.u32 256, 24
        %850 = vbcast.lane.b32.xlu0 %v836, %s849
        %v851 = vpop.permute.xlu0 %850
        %s853 = sor.u32 256, 32
        %854 = vbcast.lane.b32.xlu0 %v836, %s853
        %v855 = vpop.permute.xlu0 %854
        %s857 = sor.u32 256, 40
        %858 = vbcast.lane.b32.xlu0 %v836, %s857
        %v859 = vpop.permute.xlu0 %858
        %s861 = sor.u32 256, 48
        %862 = vbcast.lane.b32.xlu0 %v836, %s861
        %v863 = vpop.permute.xlu0 %862
        %s865 = sor.u32 256, 56
        %866 = vbcast.lane.b32.xlu0 %v836, %s865
        %v867 = vpop.permute.xlu0 %866
        %v868 = vmul.f32 %v243, %v839
        %v869 = vmul.f32 %v244, %v839
        %v870 = vmul.f32 %v245, %v843
        %v871 = vmul.f32 %v246, %v843
        %v872 = vmul.f32 %v247, %v847
        %v873 = vmul.f32 %v248, %v847
        %v874 = vmul.f32 %v249, %v851
        %v875 = vmul.f32 %v250, %v851
        %v876 = vmul.f32 %v251, %v855
        %v877 = vmul.f32 %v252, %v855
        %v878 = vmul.f32 %v253, %v859
        %v879 = vmul.f32 %v254, %v859
        %v880 = vmul.f32 %v255, %v863
        %v881 = vmul.f32 %v256, %v863
        %v882 = vmul.f32 %v257, %v867
        %v883 = vmul.f32 %v258, %v867
        %884 = vst [vmem:[%s242] sm:$0xff] %v868
        %885 = vst [vmem:[%s242 + $0x8] sm:$0xff] %v869
        %886 = vst [vmem:[%s242 + $0x10] sm:$0xff] %v870
        %887 = vst [vmem:[%s242 + $0x18] sm:$0xff] %v871
        %888 = vst [vmem:[%s242 + $0x20] sm:$0xff] %v872
        %889 = vst [vmem:[%s242 + $0x28] sm:$0xff] %v873
        %890 = vst [vmem:[%s242 + $0x30] sm:$0xff] %v874
        %891 = vst [vmem:[%s242 + $0x38] sm:$0xff] %v875
        %892 = vst [vmem:[%s242 + $0x40] sm:$0xff] %v876
        %893 = vst [vmem:[%s242 + $0x48] sm:$0xff] %v877
        %894 = vst [vmem:[%s242 + $0x50] sm:$0xff] %v878
        %895 = vst [vmem:[%s242 + $0x58] sm:$0xff] %v879
        %896 = vst [vmem:[%s242 + $0x60] sm:$0xff] %v880
        %897 = vst [vmem:[%s242 + $0x68] sm:$0xff] %v881
        %898 = vst [vmem:[%s242 + $0x70] sm:$0xff] %v882
        %899 = vst [vmem:[%s242 + $0x78] sm:$0xff] %v883
        %s900 = sand.u32 %s140, 1
        %s901 = scalar_lea.sflag [#allocation4], %s900
        %s902 = sand.u32 %s140, 1
        %s903 = smul.addr %s902, 128
        %s904 = scalar_lea.vmem [#allocation5], %s903
        // Predicated region
        $region45: #{tpu_custom_call.1} parent=39 // pred_check
          %p905 = pneg %p150
        $region46: #{tpu_custom_call.1} parent=39 // pred_check_branch
          %907 = sbr.rel (%p905) target = $region48
        $region47: #{tpu_custom_call.1} parent=39 // pred_region
          %s909 = ssub.s32 2048, 2048
          %910 = vsyncadd %s901, %s909
          %s911 = smul.addr %s22, 16
          %s912 = smul.addr %s911, 128
          %s913 = scalar_lea.hbm %s5, %s912
          %s914 = sshll.u32 %s904, 4
          %s915 = int_to_ptr.vmem [resolvable:$true] %s914
          %920 = dma.vmem_to_hbm [thread:$0]  %s915, 2048, %s913, %s901, 256, 256, 16
        $region48: #{tpu_custom_call.1} parent=39 // pred_fallthru
          _
      $region40: #{tpu_custom_call.1} parent=5 // pred_fallthru
        _
      %p921 = scmp.le.s32.totalorder 2, %s17
      // Predicated region
      $region49: #{tpu_custom_call.1} parent=5 // pred_check
        %p922 = pneg %p921
      $region50: #{tpu_custom_call.1} parent=5 // pred_check_branch
        %924 = sbr.rel (%p922) target = $region52
      $region51: #{tpu_custom_call.1} parent=5 // pred_region
        %s925 = ssub.s32 %s17, 2
        // Predicated region
        $region53: #{tpu_custom_call.1} parent=51 // pred_check
          %p926 = pneg %p156
        $region54: #{tpu_custom_call.1} parent=51 // pred_check_branch
          %928 = sbr.rel (%p926) target = $region56
        $region55: #{tpu_custom_call.1} parent=51 // pred_region
          %s929 = sand.u32 %s141, 1
          %s930 = scalar_lea.sflag [#allocation4], %s929
          %s931 = sand.u32 %s141, 1
          %s932 = smul.addr %s931, 128
          %s933 = scalar_lea.vmem [#allocation5], %s932
          %934 = dma.done %s930, 2048
        $region56: #{tpu_custom_call.1} parent=51 // pred_fallthru
          _
      $region52: #{tpu_custom_call.1} parent=5 // pred_fallthru
        _
    $region6: #{tpu_custom_call.1} parent=1 // loop_footer
      %s21 = sadd.s32 1, %s17
    $region7: #{tpu_custom_call.1} parent=1 // loop_footer_branch
      %16 = sbr.rel target = $region3
    $region8: #{tpu_custom_call.1} parent=1 // loop_exit
      _
    %935 = vsyncpa [#allocation3], 1
    %s936 = scalar_lea.sflag [#allocation3], 1
    %937 = vsyncpa %s936, 1
    %938 = vsyncpa [#allocation4], 1
    %s939 = scalar_lea.sflag [#allocation4], 1
    %940 = vsyncpa %s939, 1

</llo_original>
